<compile_context>
chip_gen: v7x
topology: tpu7x:2x2x1
jax: 0.10.0
libtpu: 0.0.40
codegen_flags: <defaults>
</compile_context>

<pallas_src>
import functools

import jax
import jax.numpy as jnp
from jax import lax
from jax.experimental import pallas as pl
from jax.experimental.pallas import tpu as pltpu


# ---------------------------------------------------------------------------
# Helpers
# ---------------------------------------------------------------------------

def _pick_tile(dim, target, align):
    """Largest tile <= target that divides `dim` and is a multiple of `align`.

    Falls back to the full dimension (always legal: a block dim equal to the
    full array dim satisfies the (8,128) rule) if no aligned divisor exists.
    """
    if dim <= target:
        return dim
    t = (target // align) * align
    while t >= align:
        if dim % t == 0:
            return t
        t -= align
    return dim


# ---------------------------------------------------------------------------
# Tiled linear:  y = x @ w + b
# ---------------------------------------------------------------------------

def _linear_kernel(x_ref, w_ref, b_ref, o_ref, acc_ref):
    # x: (tm, tk) bf16, w: (tk, tn) bf16, b: (1, tn) f32 -> o: (tm, tn)
    @pl.when(pl.program_id(2) == 0)
    def _():
        acc_ref[...] = jnp.zeros_like(acc_ref)

    acc_ref[...] += jnp.dot(x_ref[...], w_ref[...],
                            preferred_element_type=jnp.float32)

    @pl.when(pl.program_id(2) == pl.num_programs(2) - 1)
    def _():
        o_ref[...] = (acc_ref[...] + b_ref[...]).astype(o_ref.dtype)


def linear(x2d, w, b, *, out_dtype, tm=256, tn=512, tk=512):
    """y = x2d @ w + b with M/N/K tiling, f32 accumulation in VMEM scratch.

    Default tile targets (256, 512, 512) keep the double-buffered bf16 blocks
    well under the default scoped-VMEM limit on v5e/v6e and under v7x's 64 MiB.
    """
    M, K = x2d.shape
    N = w.shape[1]
    tm = _pick_tile(M, tm, 8)
    tn = _pick_tile(N, tn, 128)
    tk = _pick_tile(K, tk, 128)
    grid = (M // tm, N // tn, K // tk)
    return pl.pallas_call(
        _linear_kernel,
        out_shape=jax.ShapeDtypeStruct((M, N), out_dtype),
        grid=grid,
        in_specs=[
            pl.BlockSpec((tm, tk), lambda i, j, k: (i, k)),
            pl.BlockSpec((tk, tn), lambda i, j, k: (k, j)),
            pl.BlockSpec((1, tn), lambda i, j, k: (0, j)),
        ],
        out_specs=pl.BlockSpec((tm, tn), lambda i, j, k: (i, j)),
        scratch_shapes=[pltpu.VMEM((tm, tn), jnp.float32)],
        compiler_params=pltpu.CompilerParams(
            dimension_semantics=("parallel", "parallel", "arbitrary")),
    )(x2d, w, b.reshape(1, N).astype(jnp.float32))


# ---------------------------------------------------------------------------
# Attention: all heads per grid step, lane-dense (N, E) output
# ---------------------------------------------------------------------------

def _attention_kernel(qkv_ref, o_ref, *, num_heads, head_dim, scale):
    E = num_heads * head_dim
    D = head_dim
    qkv = qkv_ref[0]  # (N, 3E) bf16, columns = [Q | K | V], head-major

    heads = []
    for h in range(num_heads):
        q = qkv[:, h * D:(h + 1) * D]
        k = qkv[:, E + h * D:E + (h + 1) * D]
        v = qkv[:, 2 * E + h * D:2 * E + (h + 1) * D]

        # energy = q @ k^T, contracting last dims -> no explicit transpose.
        s = lax.dot_general(q, k, (((1,), (1,)), ((), ())),
                            preferred_element_type=jnp.float32)  # (N, N) f32

        # Softmax in f32.  Reference semantics: softmax first, THEN divide by
        # sqrt(emb_size).  Both the normalization and the scale are applied to
        # the (N, D) output instead of the (N, N) matrix; the reciprocal runs
        # on the EUP slot.
        m = jnp.max(s, axis=-1, keepdims=True)
        p = jnp.exp(s - m)
        l = jnp.sum(p, axis=-1, keepdims=True)
        o = jnp.dot(p.astype(v.dtype), v, preferred_element_type=jnp.float32)
        heads.append(o * (scale * pl.reciprocal(l, approx=True)))

    # Lane-dense store: heads concatenated along the last dim -> one (N, E)
    # write, and no 'b h n d -> b n (h d)' HBM transpose afterwards.
    o_ref[0] = jnp.concatenate(heads, axis=-1).astype(o_ref.dtype)


def attention(qkv, *, emb_size, num_heads):
    """softmax(q k^T)/sqrt(emb_size) @ v per head; qkv is (B, N, 3E) bf16."""
    B, N, three_e = qkv.shape
    assert three_e == 3 * emb_size
    D = emb_size // num_heads
    scale = 1.0 / (float(emb_size) ** 0.5)
    kern = functools.partial(_attention_kernel, num_heads=num_heads,
                             head_dim=D, scale=scale)
    return pl.pallas_call(
        kern,
        out_shape=jax.ShapeDtypeStruct((B, N, emb_size), qkv.dtype),
        grid=(B,),  # parallel axis of extent B -> shards across v7x's 2 TCs
        in_specs=[pl.BlockSpec((1, N, 3 * emb_size), lambda b: (b, 0, 0))],
        out_specs=pl.BlockSpec((1, N, emb_size), lambda b: (b, 0, 0)),
        compiler_params=pltpu.CompilerParams(
            dimension_semantics=("parallel",)),
    )(qkv)


# ---------------------------------------------------------------------------
# Module wrapper
# ---------------------------------------------------------------------------

def permute_qkv_params(qkv_w, qkv_b, num_heads, head_dim):
    """One-time re-layout of the qkv weight columns (off the hot path).

    PyTorch layout (per the rearrange 'b n (h d qkv) -> ...') has output
    column  c = h*D*3 + d*3 + s  (s in {q,k,v}).  We permute to
    c' = s*E + h*D + d  so the qkv linear directly emits [Q | K | V],
    each head-major, killing the strided 5-D activation transpose.
    """
    E = num_heads * head_dim
    w = qkv_w.reshape(E, num_heads, head_dim, 3)
    w = jnp.transpose(w, (0, 3, 1, 2)).reshape(E, 3 * E)
    b = qkv_b.reshape(num_heads, head_dim, 3)
    b = jnp.transpose(b, (2, 0, 1)).reshape(3 * E)
    return w, b


def multi_head_attention(x, params, *, emb_size, num_heads):
    """Forward pass matching the PyTorch MultiHeadAttention module.

    x: (B, N, E) float32
    params: dict with qkv_w (E, 3E), qkv_b (3E,), proj_w (E, E), proj_b (E,)
    """
    B, N, E = x.shape
    assert E == emb_size and E % num_heads == 0
    D = E // num_heads

    # One-time weight re-layout (tiny; weights only, no activation traffic).
    qkv_w, qkv_b = permute_qkv_params(params["qkv_w"], params["qkv_b"],
                                      num_heads, D)

    # bf16 operands for the MXU; all accumulation stays in f32.
    x_b = x.astype(jnp.bfloat16).reshape(B * N, E)
    qkv_w = qkv_w.astype(jnp.bfloat16)
    proj_w = params["proj_w"].astype(jnp.bfloat16)

    # qkv linear -> (B, N, 3E); columns already [Q | K | V] head-major.
    qkv = linear(x_b, qkv_w, qkv_b, out_dtype=jnp.bfloat16)
    qkv = qkv.reshape(B, N, 3 * E)

    # attention -> (B, N, E) with heads concatenated along the last dim.
    att = attention(qkv, emb_size=emb_size, num_heads=num_heads)

    # output projection -> (B, N, E) f32.  reshape is contiguous (free).
    out = linear(att.reshape(B * N, E), proj_w, params["proj_b"],
                 out_dtype=jnp.float32)
    return out.reshape(B, N, E)


def init_params(key, emb_size):
    """Deterministic init mimicking nn.Linear's uniform(-1/sqrt(fan_in), ...)."""
    k1, k2, k3, k4 = jax.random.split(key, 4)
    bound = 1.0 / (emb_size ** 0.5)
    return {
        "qkv_w": jax.random.uniform(
            k1, (emb_size, 3 * emb_size), jnp.float32, -bound, bound),
        "qkv_b": jax.random.uniform(k2, (3 * emb_size,), jnp.float32, -bound, bound),
        "proj_w": jax.random.uniform(
            k3, (emb_size, emb_size), jnp.float32, -bound, bound),
        "proj_b": jax.random.uniform(k4, (emb_size,), jnp.float32, -bound, bound),
    }


def reference_forward(x, params, *, emb_size, num_heads):
    """Pure-JAX f32 reference replicating the PyTorch forward, for validation."""
    B, N, E = x.shape
    H, D = num_heads, E // num_heads
    qkv = x @ params["qkv_w"] + params["qkv_b"]
    qkv = qkv.reshape(B, N, H, D, 3).transpose(4, 0, 2, 1, 3)
    q, k, v = qkv[0], qkv[1], qkv[2]
    energy = jnp.einsum("bhqd,bhkd->bhqk", q, k)
    att = jax.nn.softmax(energy, axis=-1) / (emb_size ** 0.5)
    out = jnp.einsum("bhal,bhlv->bhav", att, v)
    out = out.transpose(0, 2, 1, 3).reshape(B, N, E)
    return out @ params["proj_w"] + params["proj_b"]


if __name__ == "__main__":
    # Small shapes consistent with the module: batch=2, seq=8, emb=32, heads=4.
    B, N, EMB, HEADS = 2, 8, 32, 4

    key = jax.random.PRNGKey(0)
    kx, kp = jax.random.split(key)
    x = jax.random.normal(kx, (B, N, EMB), dtype=jnp.float32)
    params = init_params(kp, EMB)

    out = multi_head_attention(x, params, emb_size=EMB, num_heads=HEADS)
    out = jax.block_until_ready(out)

    ref = reference_forward(x, params, emb_size=EMB, num_heads=HEADS)
    assert out.shape == (B, N, EMB)
    # Tolerance loosened vs. the pure-f32 reference because MXU operands are
    # bf16 (f32 accumulation); observed error is O(1e-3).
    assert jnp.allclose(out, ref, atol=2e-2, rtol=2e-2), "mismatch vs reference"

    print("KERNEL_OK")
</pallas_src>

<mosaic_0001>
module attributes {stable_mosaic.version = 11 : i64} {
  func.func @_linear_kernel(%arg0: i32, %arg1: i32, %arg2: i32, %arg3: memref<16x32xbf16, #tpu.memory_space<vmem>>, %arg4: memref<32x96xbf16, #tpu.memory_space<vmem>>, %arg5: memref<1x96xf32, #tpu.memory_space<vmem>>, %arg6: memref<16x96xbf16, #tpu.memory_space<vmem>>, %arg7: memref<16x96xf32, #tpu.memory_space<vmem>>) attributes {dimension_semantics = [#tpu.dimension_semantics<parallel>, #tpu.dimension_semantics<parallel>, #tpu.dimension_semantics<arbitrary>], iteration_bounds = array<i64: 1, 1, 1>, scalar_prefetch = 0 : i64, scratch_operands = 1 : i64, tpu.core_type = #tpu.core_type<tc>, window_params = [{transform_indices = @transform_0, window_bounds = array<i64: 16, 32>}, {transform_indices = @transform_1, window_bounds = array<i64: 32, 96>}, {transform_indices = @transform_2, window_bounds = array<i64: 1, 96>}, {transform_indices = @transform_3, window_bounds = array<i64: 16, 96>}]} {
    %c0_i32 = arith.constant 0 : i32
    %0 = arith.cmpi eq, %arg2, %c0_i32 : i32
    %1 = arith.extui %0 : i1 to i32
    %c0_i32_0 = arith.constant 0 : i32
    %2 = arith.cmpi ne, %1, %c0_i32_0 : i32
    scf.if %2 {
      %cst_10 = arith.constant 0.000000e+00 : f32
      %12 = vector.broadcast %cst_10 : f32 to vector<16x96xf32>
      %c0_11 = arith.constant 0 : index
      %c0_12 = arith.constant 0 : index
      %13 = vector.load %arg7[%c0_11, %c0_12] : memref<16x96xf32, #tpu.memory_space<vmem>>, vector<16x96xf32>
      tpu.vector_store %arg7[%c0_11, %c0_12], %12 {strides = array<i32>} : memref<16x96xf32, #tpu.memory_space<vmem>>, vector<16x96xf32>,
    } else {
    }
    %c0 = arith.constant 0 : index
    %c0_1 = arith.constant 0 : index
    %3 = vector.load %arg7[%c0, %c0_1] : memref<16x96xf32, #tpu.memory_space<vmem>>, vector<16x96xf32>
    %c0_2 = arith.constant 0 : index
    %c0_3 = arith.constant 0 : index
    %4 = vector.load %arg3[%c0_2, %c0_3] : memref<16x32xbf16, #tpu.memory_space<vmem>>, vector<16x32xbf16>
    %c0_4 = arith.constant 0 : index
    %c0_5 = arith.constant 0 : index
    %5 = vector.load %arg4[%c0_4, %c0_5] : memref<32x96xbf16, #tpu.memory_space<vmem>>, vector<32x96xbf16>
    %cst = arith.constant dense<0.000000e+00> : vector<16x96xf32>
    %6 = tpu.matmul %4, %5, %cst {dimension_numbers = #tpu.dot_dimension_numbers<[1], [0], [0], [1], [0, 0, 1, 1], [], []>} : vector<16x32xbf16>, vector<32x96xbf16>, vector<16x96xf32> -> vector<16x96xf32>
    %7 = arith.addf %3, %6 : vector<16x96xf32>
    %c0_6 = arith.constant 0 : index
    %c0_7 = arith.constant 0 : index
    %8 = vector.load %arg7[%c0_6, %c0_7] : memref<16x96xf32, #tpu.memory_space<vmem>>, vector<16x96xf32>
    tpu.vector_store %arg7[%c0_6, %c0_7], %7 {strides = array<i32>} : memref<16x96xf32, #tpu.memory_space<vmem>>, vector<16x96xf32>,
    %c0_i32_8 = arith.constant 0 : i32
    %9 = arith.cmpi eq, %arg2, %c0_i32_8 : i32
    %10 = arith.extui %9 : i1 to i32
    %c0_i32_9 = arith.constant 0 : i32
    %11 = arith.cmpi ne, %10, %c0_i32_9 : i32
    scf.if %11 {
      %c0_10 = arith.constant 0 : index
      %c0_11 = arith.constant 0 : index
      %12 = vector.load %arg7[%c0_10, %c0_11] : memref<16x96xf32, #tpu.memory_space<vmem>>, vector<16x96xf32>
      %c0_12 = arith.constant 0 : index
      %c0_13 = arith.constant 0 : index
      %13 = vector.load %arg5[%c0_12, %c0_13] : memref<1x96xf32, #tpu.memory_space<vmem>>, vector<1x96xf32>
      %14 = vector.broadcast %13 : vector<1x96xf32> to vector<16x96xf32>
      %15 = arith.addf %12, %14 : vector<16x96xf32>
      %16 = arith.truncf %15 : vector<16x96xf32> to vector<16x96xbf16>
      %c0_14 = arith.constant 0 : index
      %c0_15 = arith.constant 0 : index
      %17 = vector.load %arg6[%c0_14, %c0_15] : memref<16x96xbf16, #tpu.memory_space<vmem>>, vector<16x96xbf16>
      tpu.vector_store %arg6[%c0_14, %c0_15], %16 {strides = array<i32>} : memref<16x96xbf16, #tpu.memory_space<vmem>>, vector<16x96xbf16>,
    } else {
    }
    return
  }
  func.func @transform_0(%arg0: i32, %arg1: i32, %arg2: i32) -> (i32, i32) {
    %c0_i32 = arith.constant 0 : i32
    return %arg0, %arg2 : i32, i32
  }
  func.func @transform_1(%arg0: i32, %arg1: i32, %arg2: i32) -> (i32, i32) {
    %c0_i32 = arith.constant 0 : i32
    return %arg2, %arg1 : i32, i32
  }
  func.func @transform_2(%arg0: i32, %arg1: i32, %arg2: i32) -> (i32, i32) {
    %c0_i32 = arith.constant 0 : i32
    %c0_i32_0 = arith.constant 0 : i32
    return %c0_i32, %arg1 : i32, i32
  }
  func.func @transform_3(%arg0: i32, %arg1: i32, %arg2: i32) -> (i32, i32) {
    %c0_i32 = arith.constant 0 : i32
    return %arg0, %arg1 : i32, i32
  }
}

</mosaic_0001>

<llo_original>
// kernel: tpu_custom_call.1
$region0: #{tpu_custom_call.1}
  #allocation0 [shape = 'u32[]', space=smem, size = 0x4, offset = 0x4, fixed_abs, tag = 'smem constant byte address 0x4 - core index']
  #allocation1 [shape = 'u32[144,128]{1,0:T(1,128)}', space=vmem, size = 0x12000, scoped, tag = 'internal scratch']
  #allocation2 [shape = 'f32[16,96]{1,0:T(8,128)}', space=vmem, size = 0x2000, scoped, tag = 'scratch operand']
  %s0 = inlined_call_operand.hbm [shape: bf16[16,32], index: 0, kind: input, shape index: {}]
  %s1 = inlined_call_operand.hbm [shape: bf16[32,96], index: 1, kind: input, shape index: {}]
  %s2 = inlined_call_operand.vmem [shape: f32[1,96], index: 2, kind: input, shape index: {}]
  %s3 = inlined_call_operand.hbm [shape: bf16[16,96], index: 3, kind: output, shape index: {}]
  %s4 = sld [smem:[#allocation0]]
  $region38: #{tpu_custom_call.1} parent=0
    _
  %s6 = ssub.s32 1, %s4
  %s7 = scalar_select 0, %s6, %s4
  $region1: #{tpu_custom_call.1} parent=0
    #allocation3 [shape = 'u8[4096]{0}', space=vmem, size = 0x1000, scoped, tag = 'input window, operand 0, single buffered']
    #allocation4 [shape = 's32[1]{0}', space=sflag, size = 0x4, scoped, tag = 'scoped memory for tpu_custom_call.1']
    #allocation5 [shape = 's32[1]{0}', space=sflag, size = 0x4, scoped, tag = 'scoped memory for tpu_custom_call.1']
    #allocation6 [shape = 'u8[8192]{0}', space=vmem, size = 0x2000, scoped, tag = 'input window, operand 1, single buffered']
    #allocation7 [shape = 's32[1]{0}', space=sflag, size = 0x4, scoped, tag = 'scoped memory for tpu_custom_call.1']
    #allocation8 [shape = 'u8[4096]{0}', space=vmem, size = 0x1000, scoped, tag = 'output window, operand 0, single buffered']
    %8 = vsyncpa [#allocation4], 0
    %9 = vsyncpa [#allocation7], 0
    %10 = vsyncpa [#allocation5], 0
    // Predicated region
    $region2: #{tpu_custom_call.1} parent=1 // pred_check
      _
    $region3: #{tpu_custom_call.1} parent=1 // pred_check_branch
      %12 = sbr.rel (0) target = $region5
    $region4: #{tpu_custom_call.1} parent=1 // pred_region
      %s14 = ssub.s32 128, 128
      %15 = vsyncadd [#allocation4], %s14
      %s16 = sshll.u32 [#allocation3], 4
      %s17 = int_to_ptr.vmem [resolvable:$true] %s16
      %22 = dma.hbm_to_vmem [thread:$0]  %s0, 128, %s17, [#allocation4], 64, 64, 4
    $region5: #{tpu_custom_call.1} parent=1 // pred_fallthru
      _
    // Predicated region
    $region6: #{tpu_custom_call.1} parent=1 // pred_check
      _
    $region7: #{tpu_custom_call.1} parent=1 // pred_check_branch
      %24 = sbr.rel (0) target = $region9
    $region8: #{tpu_custom_call.1} parent=1 // pred_region
      %s26 = ssub.s32 256, 256
      %27 = vsyncadd [#allocation7], %s26
      %s28 = sshll.u32 [#allocation6], 4
      %s29 = int_to_ptr.vmem [resolvable:$true] %s28
      %34 = dma.hbm_to_vmem [thread:$0]  %s1, 256, %s29, [#allocation7], 64, 64, 4
    $region9: #{tpu_custom_call.1} parent=1 // pred_fallthru
      _
    // Predicated region
    $region10: #{tpu_custom_call.1} parent=1 // pred_check
      _
    $region11: #{tpu_custom_call.1} parent=1 // pred_check_branch
      %36 = sbr.rel (0) target = $region13
    $region12: #{tpu_custom_call.1} parent=1 // pred_region
      _
    $region13: #{tpu_custom_call.1} parent=1 // pred_fallthru
      _
    // Predicated region
    $region14: #{tpu_custom_call.1} parent=1 // pred_check
      _
    $region15: #{tpu_custom_call.1} parent=1 // pred_check_branch
      %38 = sbr.rel (0) target = $region17
    $region16: #{tpu_custom_call.1} parent=1 // pred_region
      %39 = dma.done [#allocation4], 128
    $region17: #{tpu_custom_call.1} parent=1 // pred_fallthru
      _
    // Predicated region
    $region18: #{tpu_custom_call.1} parent=1 // pred_check
      _
    $region19: #{tpu_custom_call.1} parent=1 // pred_check_branch
      %41 = sbr.rel (0) target = $region21
    $region20: #{tpu_custom_call.1} parent=1 // pred_region
      %42 = dma.done [#allocation7], 256
    $region21: #{tpu_custom_call.1} parent=1 // pred_fallthru
      _
    %p44 = scmp.eq.s32.totalorder 0, 0
    // Predicated region
    $region22: #{tpu_custom_call.1} parent=1 // pred_check
      %p45 = pneg %p44
    $region23: #{tpu_custom_call.1} parent=1 // pred_check_branch
      %47 = sbr.rel (%p45) target = $region25
    $region24: #{tpu_custom_call.1} parent=1 // pred_region
      %vm48 = vcmask 785408
      %49 = vst.msk [vmem:[#allocation2] sm:$0xff] %vm48, 0.0
      %50 = vst.msk [vmem:[#allocation2 + $0x8] sm:$0xff] %vm48, 0.0
    $region25: #{tpu_custom_call.1} parent=1 // pred_fallthru
      _
    %v51 = vld [vmem:[#allocation2] sm:$0xff]
    %v52 = vld [vmem:[#allocation2 + $0x8] sm:$0xff]
    %v53 = vld [vmem:[#allocation3] sm:$0xf]
    %v54 = vld [vmem:[#allocation3 + $0x4] sm:$0xf]
    %v55 = vld [vmem:[#allocation6] sm:$0xf]
    %v56 = vld [vmem:[#allocation6 + $0x4] sm:$0xf]
    %v57 = vld [vmem:[#allocation6 + $0x8] sm:$0xf]
    %v58 = vld [vmem:[#allocation6 + $0xc] sm:$0xf]
    %v61 = vunpack.c.l.b16 %v53
    %v62 = vunpack.c.l.b16 %v54
    %v63 = vpack.c.b16 %v62, %v61
    %v68 = vunpack.c.l.b16 %v55
    %v69 = vunpack.c.l.b16 %v56
    %v70 = vunpack.c.l.b16 %v57
    %v71 = vunpack.c.l.b16 %v58
    %v72 = vpack.c.b16 %v69, %v68
    %v73 = vpack.c.b16 %v71, %v70
    %vm76 = vcmask 261120
    %v78 = vsel %vm76, %v63, 0
    %80 = vmatprep.subr.bf16.mxu0 0
    %81 = vmatpush1.bf16.msra.mxu0 %v72
    %82 = vmatprep.subr.bf16.mxu0 0
    %83 = vmatpush1.bf16.msra.mxu0 %v73
    %84 = vmatprep.subr.bf16.mxu0 0
    %85 = vmatpush1.bf16.msra.mxu0 0
    %86 = vmatprep.subr.bf16.mxu0 0
    %87 = vmatpush1.bf16.msra.mxu0 0
    %88 = vmatprep.subr.bf16.mxu0 0
    %89 = vmatpush1.bf16.msra.mxu0 0
    %90 = vmatprep.subr.bf16.mxu0 0
    %91 = vmatpush1.bf16.msra.mxu0 0
    %92 = vmatprep.subr.bf16.mxu0 0
    %93 = vmatpush1.bf16.msra.mxu0 0
    %94 = vmatprep.subr.bf16.mxu0 0
    %95 = vmatpush1.bf16.msra.mxu0 0
    %96 = vmatprep.subr.bf16.mxu0 0
    %97 = vmatpush1.bf16.msra.mxu0 0
    %98 = vmatprep.subr.bf16.mxu0 0
    %99 = vmatpush1.bf16.msra.mxu0 0
    %100 = vmatprep.subr.bf16.mxu0 0
    %101 = vmatpush1.bf16.msra.mxu0 0
    %102 = vmatprep.subr.bf16.mxu0 0
    %103 = vmatpush1.bf16.msra.mxu0 0
    %104 = vmatprep.subr.bf16.mxu0 0
    %105 = vmatpush1.bf16.msra.mxu0 0
    %106 = vmatprep.subr.bf16.mxu0 0
    %107 = vmatpush1.bf16.msra.mxu0 0
    %108 = vmatprep.subr.bf16.mxu0 0
    %109 = vmatpush1.bf16.msra.mxu0 0
    %110 = vmatprep.subr.bf16.mxu0 0
    %111 = vmatpush1.bf16.msra.mxu0 0
    %112 = vmatprep.mubr.bf16.mxu0 0
    %113 = vmatmul.mubr.bf16.gmra.mrb[0].mxu0 %v78
    %v114 = vpop.f32.mrb[0].mxu0
    %v115 = vadd.f32 0.0, %v114
    %v116 = vpop.f32.mrb[0].mxu0
    %v117 = vpop.f32.mrb[0].mxu0
    %v118 = vadd.f32 0.0, %v117
    %v119 = vpop.f32.mrb[0].mxu0
    %120 = vdwg.mxu0
    %v121 = vadd.f32 %v51, %v115
    %v122 = vadd.f32 %v52, %v118
    %vm123 = vcmask 785408
    %124 = vst.msk [vmem:[#allocation2] sm:$0xff] %vm123, %v121
    %125 = vst.msk [vmem:[#allocation2 + $0x8] sm:$0xff] %vm123, %v122
    // Predicated region
    $region26: #{tpu_custom_call.1} parent=1 // pred_check
      %p126 = pneg %p44
    $region27: #{tpu_custom_call.1} parent=1 // pred_check_branch
      %128 = sbr.rel (%p126) target = $region29
    $region28: #{tpu_custom_call.1} parent=1 // pred_region
      %v129 = vld [vmem:[#allocation2] sm:$0xff]
      %v130 = vld [vmem:[#allocation2 + $0x8] sm:$0xff]
      %v131 = vld [vmem:[%s2] sm:$0x1]
      %v133 = vlaneseq
      %v134 = vshrl.u32 %v133, 7
      %v135 = vsub.s32 0, %v134
      %v136 = vrot.slane %v131, %v135
      %v138 = vadd.f32 %v129, %v136
      %v139 = vadd.f32 %v130, %v136
      %v140 = vpack.c.bf16 %v139, %v138
      %v142 = vunpack.c.l.b16 %v140
      %v143 = vunpack.c.h.b16 %v140
      %v144 = vpack.c.b16 %v142, %v142
      %v145 = vpack.c.b16 %v143, %v143
      %vm148 = vcmask 781312
      %149 = vst.msk [vmem:[#allocation8] sm:$0xf] %vm148, %v144
      %150 = vst.msk [vmem:[#allocation8 + $0x4] sm:$0xf] %vm148, %v145
    $region29: #{tpu_custom_call.1} parent=1 // pred_fallthru
      _
    // Predicated region
    $region30: #{tpu_custom_call.1} parent=1 // pred_check
      _
    $region31: #{tpu_custom_call.1} parent=1 // pred_check_branch
      %152 = sbr.rel (0) target = $region33
    $region32: #{tpu_custom_call.1} parent=1 // pred_region
      %s154 = ssub.s32 128, 128
      %155 = vsyncadd [#allocation5], %s154
      %s156 = sshll.u32 [#allocation8], 4
      %s157 = int_to_ptr.vmem [resolvable:$true] %s156
      %162 = dma.vmem_to_hbm [thread:$0]  %s157, 128, %s3, [#allocation5], 64, 64, 4
    $region33: #{tpu_custom_call.1} parent=1 // pred_fallthru
      _
    // Predicated region
    $region34: #{tpu_custom_call.1} parent=1 // pred_check
      _
    $region35: #{tpu_custom_call.1} parent=1 // pred_check_branch
      %164 = sbr.rel (0) target = $region37
    $region36: #{tpu_custom_call.1} parent=1 // pred_region
      %165 = dma.done [#allocation5], 128
    $region37: #{tpu_custom_call.1} parent=1 // pred_fallthru
      _
    %166 = vsyncpa [#allocation4], 1
    %167 = vsyncpa [#allocation7], 1
    %168 = vsyncpa [#allocation5], 1

</llo_original>
